<compile_context>
chip_gen: v6e
topology: v6e:2x2x1
jax: 0.10.0
libtpu: 0.0.40
codegen_flags: <defaults>
</compile_context>

<pallas_src>
import functools

import jax
import jax.numpy as jnp
from jax.experimental import pallas as pl
from jax.experimental.pallas import tpu as pltpu


REP_NOISE = 1e-6


def actor_forward_kernel(
    x_ref,      # (TB, IN)
    w0_ref,     # (IN, H0)
    w1_ref,     # (H0, H1)
    wh_ref,     # (H1, 2A)   fused [mu | sigma] head
    b_ref,      # (1, H0+H1+2A) packed biases [b0 | b1 | bmu | bsg]
    out_ref,    # (TB, 2A)   fused [mu | sigma] output slab
    *,
    h0: int,
    h1: int,
    n_actions: int,
):
    x = x_ref[...]

    # Static views into the packed bias operand.
    b0 = b_ref[:, 0:h0]
    b1 = b_ref[:, h0:h0 + h1]
    bh = b_ref[:, h0 + h1:h0 + h1 + 2 * n_actions]

    # input_layer + relu
    h = jnp.dot(x, w0_ref[...], preferred_element_type=jnp.float32) + b0
    h = jnp.maximum(h, 0.0)

    # hidden_layers[0] + relu
    h = jnp.dot(h, w1_ref[...], preferred_element_type=jnp.float32) + b1
    h = jnp.maximum(h, 0.0)

    # fused mu/sigma head: (TB, 2A); clamp only the sigma half.
    head = jnp.dot(h, wh_ref[...], preferred_element_type=jnp.float32) + bh
    col = jax.lax.broadcasted_iota(jnp.int32, head.shape, 1)
    clipped = jnp.clip(head, REP_NOISE, 1.0)
    out = jnp.where(col >= n_actions, clipped, head)

    out_ref[...] = out.astype(out_ref.dtype)


def actor_forward(state, params):
    """ActorNetwork forward: returns (mu, sigma).

    The whole network runs in one pallas_call; batch is optionally tiled with a
    1-D "parallel" grid so big batches pipeline / shard across TensorCores.
    """
    (w0, b0), (w1, b1), (wmu, bmu), (wsg, bsg) = params
    B, IN = state.shape
    H0 = w0.shape[1]
    H1 = w1.shape[1]
    A = wmu.shape[1]

    # Fuse heads and pack biases in the wrapper (one-time XLA concat).
    wh = jnp.concatenate([wmu, wsg], axis=1)                  # (H1, 2A)
    b_packed = jnp.concatenate([b0, b1, bmu, bsg], axis=1)    # (1, H0+H1+2A)

    # Batch tile: whole batch if small; 256-row tiles (multiple of 8 sublanes)
    # otherwise. At these weight sizes VMEM is a non-issue on v5e/v6e/v7x.
    TB = B if B <= 256 else 256
    grid = (pl.cdiv(B, TB),)

    flops = 2 * B * (IN * H0 + H0 * H1 + H1 * 2 * A)
    bytes_accessed = 4 * (
        B * IN + IN * H0 + H0 * H1 + H1 * 2 * A + (H0 + H1 + 2 * A) + B * 2 * A
    )

    kernel = functools.partial(
        actor_forward_kernel, h0=H0, h1=H1, n_actions=A
    )

    out = pl.pallas_call(
        kernel,
        out_shape=jax.ShapeDtypeStruct((B, 2 * A), jnp.float32),
        grid=grid,
        in_specs=[
            pl.BlockSpec((TB, IN), lambda i: (i, 0)),          # activations: tiled
            pl.BlockSpec((IN, H0), lambda i: (0, 0)),          # weights: resident
            pl.BlockSpec((H0, H1), lambda i: (0, 0)),
            pl.BlockSpec((H1, 2 * A), lambda i: (0, 0)),
            pl.BlockSpec((1, H0 + H1 + 2 * A), lambda i: (0, 0)),
        ],
        out_specs=pl.BlockSpec((TB, 2 * A), lambda i: (i, 0)),
        compiler_params=pltpu.CompilerParams(
            dimension_semantics=("parallel",)
        ),
        cost_estimate=pl.CostEstimate(
            flops=flops, transcendentals=0, bytes_accessed=bytes_accessed
        ),
    )(state, w0, w1, wh, b_packed)

    mu = out[:, :A]
    sigma = out[:, A:]
    return mu, sigma


def init_params(key, input_size, hidden_size, n_actions):
    """Deterministic synthetic init matching nn.Linear shapes.

    Weights are (in_features, out_features); biases are (1, out_features)."""
    def linear(k, fan_in, fan_out):
        kw, kb = jax.random.split(k)
        bound = 1.0 / jnp.sqrt(fan_in)
        w = jax.random.uniform(kw, (fan_in, fan_out), jnp.float32, -bound, bound)
        b = jax.random.uniform(kb, (1, fan_out), jnp.float32, -bound, bound)
        return w, b

    k0, k1, k2, k3 = jax.random.split(key, 4)
    p_in = linear(k0, input_size, hidden_size[0])
    p_h1 = linear(k1, hidden_size[0], hidden_size[1])
    p_mu = linear(k2, hidden_size[1], n_actions)
    p_sg = linear(k3, hidden_size[1], n_actions)
    return p_in, p_h1, p_mu, p_sg


def actor_forward_ref(state, params):
    """Pure-JAX reference for correctness checking."""
    (w0, b0), (w1, b1), (wmu, bmu), (wsg, bsg) = params
    h = jnp.maximum(state @ w0 + b0, 0.0)
    h = jnp.maximum(h @ w1 + b1, 0.0)
    mu = h @ wmu + bmu
    sigma = jnp.clip(h @ wsg + bsg, REP_NOISE, 1.0)
    return mu, sigma


if __name__ == "__main__":
    # Small shapes consistent with the module's forward.
    batch = 8
    input_size = 16
    hidden_size = [32, 32]
    n_actions = 2

    key = jax.random.PRNGKey(0)
    k_state, k_params, k_big = jax.random.split(key, 3)

    state = jax.random.normal(k_state, (batch, input_size), dtype=jnp.float32)
    params = init_params(k_params, input_size, hidden_size, n_actions)

    mu, sigma = jax.block_until_ready(actor_forward(state, params))
    mu_ref, sigma_ref = actor_forward_ref(state, params)

    assert mu.shape == (batch, n_actions) and sigma.shape == (batch, n_actions)
    assert jnp.allclose(mu, mu_ref, atol=1e-5, rtol=1e-5)
    assert jnp.allclose(sigma, sigma_ref, atol=1e-5, rtol=1e-5)
    # Clamp floor is float32(1e-6) (slightly below the python double 1e-6).
    rep_noise_f32 = float(jnp.float32(REP_NOISE))
    assert float(sigma.min()) >= rep_noise_f32 and float(sigma.max()) <= 1.0

    # Exercise the batch-tiled (grid > 1) path as well.
    big_b = 512
    big_state = jax.random.normal(k_big, (big_b, input_size), dtype=jnp.float32)
    mu_b, sigma_b = jax.block_until_ready(actor_forward(big_state, params))
    mu_b_ref, sigma_b_ref = actor_forward_ref(big_state, params)
    assert jnp.allclose(mu_b, mu_b_ref, atol=1e-5, rtol=1e-5)
    assert jnp.allclose(sigma_b, sigma_b_ref, atol=1e-5, rtol=1e-5)

    # TODO(synk): sample_normal (rsample / tanh squashing / log_prob) involves RNG
    # sampling outside the forward hot path and is left to plain JAX if needed.
    print("KERNEL_OK")
</pallas_src>

<mosaic_0001>
module attributes {stable_mosaic.version = 11 : i64} {
  func.func @actor_forward_kernel(%arg0: i32, %arg1: memref<8x16xf32, #tpu.memory_space<vmem>>, %arg2: memref<16x32xf32, #tpu.memory_space<vmem>>, %arg3: memref<32x32xf32, #tpu.memory_space<vmem>>, %arg4: memref<32x4xf32, #tpu.memory_space<vmem>>, %arg5: memref<1x68xf32, #tpu.memory_space<vmem>>, %arg6: memref<8x4xf32, #tpu.memory_space<vmem>>) attributes {dimension_semantics = [#tpu.dimension_semantics<parallel>], iteration_bounds = array<i64: 1>, scalar_prefetch = 0 : i64, scratch_operands = 0 : i64, tpu.core_type = #tpu.core_type<tc>, window_params = [{transform_indices = @transform_0, window_bounds = array<i64: 8, 16>}, {pipeline_mode = #tpu.pipeline_mode<synchronous>, transform_indices = @transform_1, window_bounds = array<i64: 16, 32>}, {pipeline_mode = #tpu.pipeline_mode<synchronous>, transform_indices = @transform_2, window_bounds = array<i64: 32, 32>}, {pipeline_mode = #tpu.pipeline_mode<synchronous>, transform_indices = @transform_3, window_bounds = array<i64: 32, 4>}, {pipeline_mode = #tpu.pipeline_mode<synchronous>, transform_indices = @transform_4, window_bounds = array<i64: 1, 68>}, {transform_indices = @transform_5, window_bounds = array<i64: 8, 4>}]} {
    %c0 = arith.constant 0 : index
    %c0_0 = arith.constant 0 : index
    %0 = vector.load %arg1[%c0, %c0_0] : memref<8x16xf32, #tpu.memory_space<vmem>>, vector<8x16xf32>
    %c0_1 = arith.constant 0 : index
    %c0_2 = arith.constant 0 : index
    %1 = vector.load %arg5[%c0_1, %c0_2] : memref<1x68xf32, #tpu.memory_space<vmem>>, vector<1x32xf32>
    %c0_3 = arith.constant 0 : index
    %c32 = arith.constant 32 : index
    %2 = vector.load %arg5[%c0_3, %c32] : memref<1x68xf32, #tpu.memory_space<vmem>>, vector<1x32xf32>
    %c0_4 = arith.constant 0 : index
    %c64 = arith.constant 64 : index
    %3 = vector.load %arg5[%c0_4, %c64] : memref<1x68xf32, #tpu.memory_space<vmem>>, vector<1x4xf32>
    %c0_5 = arith.constant 0 : index
    %c0_6 = arith.constant 0 : index
    %4 = vector.load %arg2[%c0_5, %c0_6] : memref<16x32xf32, #tpu.memory_space<vmem>>, vector<16x32xf32>
    %cst = arith.constant dense<0.000000e+00> : vector<8x32xf32>
    %5 = tpu.matmul %0, %4, %cst {dimension_numbers = #tpu.dot_dimension_numbers<[1], [0], [0], [1], [0, 0, 1, 1], [], []>} : vector<8x16xf32>, vector<16x32xf32>, vector<8x32xf32> -> vector<8x32xf32>
    %6 = vector.broadcast %1 : vector<1x32xf32> to vector<8x32xf32>
    %7 = arith.addf %5, %6 : vector<8x32xf32>
    %cst_7 = arith.constant 0.000000e+00 : f32
    %8 = vector.broadcast %cst_7 : f32 to vector<8x32xf32>
    %9 = arith.maximumf %7, %8 : vector<8x32xf32>
    %c0_8 = arith.constant 0 : index
    %c0_9 = arith.constant 0 : index
    %10 = vector.load %arg3[%c0_8, %c0_9] : memref<32x32xf32, #tpu.memory_space<vmem>>, vector<32x32xf32>
    %cst_10 = arith.constant dense<0.000000e+00> : vector<8x32xf32>
    %11 = tpu.matmul %9, %10, %cst_10 {dimension_numbers = #tpu.dot_dimension_numbers<[1], [0], [0], [1], [0, 0, 1, 1], [], []>} : vector<8x32xf32>, vector<32x32xf32>, vector<8x32xf32> -> vector<8x32xf32>
    %12 = vector.broadcast %2 : vector<1x32xf32> to vector<8x32xf32>
    %13 = arith.addf %11, %12 : vector<8x32xf32>
    %cst_11 = arith.constant 0.000000e+00 : f32
    %14 = vector.broadcast %cst_11 : f32 to vector<8x32xf32>
    %15 = arith.maximumf %13, %14 : vector<8x32xf32>
    %c0_12 = arith.constant 0 : index
    %c0_13 = arith.constant 0 : index
    %16 = vector.load %arg4[%c0_12, %c0_13] : memref<32x4xf32, #tpu.memory_space<vmem>>, vector<32x4xf32>
    %cst_14 = arith.constant dense<0.000000e+00> : vector<8x4xf32>
    %17 = tpu.matmul %15, %16, %cst_14 {dimension_numbers = #tpu.dot_dimension_numbers<[1], [0], [0], [1], [0, 0, 1, 1], [], []>} : vector<8x32xf32>, vector<32x4xf32>, vector<8x4xf32> -> vector<8x4xf32>
    %18 = vector.broadcast %3 : vector<1x4xf32> to vector<8x4xf32>
    %19 = arith.addf %17, %18 : vector<8x4xf32>
    %20 = tpu.iota {dimensions = array<i32: 1>} : vector<8x4xi32>
    %cst_15 = arith.constant 9.99999997E-7 : f32
    %cst_16 = arith.constant 1.000000e+00 : f32
    %21 = vector.broadcast %cst_15 : f32 to vector<8x4xf32>
    %22 = arith.maximumf %21, %19 : vector<8x4xf32>
    %23 = vector.broadcast %cst_16 : f32 to vector<8x4xf32>
    %24 = arith.minimumf %23, %22 : vector<8x4xf32>
    %c2_i32 = arith.constant 2 : i32
    %25 = vector.broadcast %c2_i32 : i32 to vector<8x4xi32>
    %26 = arith.cmpi sge, %20, %25 : vector<8x4xi32>
    %27 = arith.select %26, %24, %19 : vector<8x4xi1>, vector<8x4xf32>
    %c0_17 = arith.constant 0 : index
    %c0_18 = arith.constant 0 : index
    %28 = vector.load %arg6[%c0_17, %c0_18] : memref<8x4xf32, #tpu.memory_space<vmem>>, vector<8x4xf32>
    tpu.vector_store %arg6[%c0_17, %c0_18], %27 {strides = array<i32>} : memref<8x4xf32, #tpu.memory_space<vmem>>, vector<8x4xf32>,
    return
  }
  func.func @transform_0(%arg0: i32) -> (i32, i32) {
    %c0_i32 = arith.constant 0 : i32
    %c0_i32_0 = arith.constant 0 : i32
    return %arg0, %c0_i32 : i32, i32
  }
  func.func @transform_1(%arg0: i32) -> (i32, i32) {
    %c0_i32 = arith.constant 0 : i32
    %c0_i32_0 = arith.constant 0 : i32
    %c0_i32_1 = arith.constant 0 : i32
    return %c0_i32, %c0_i32_0 : i32, i32
  }
  func.func @transform_2(%arg0: i32) -> (i32, i32) {
    %c0_i32 = arith.constant 0 : i32
    %c0_i32_0 = arith.constant 0 : i32
    %c0_i32_1 = arith.constant 0 : i32
    return %c0_i32, %c0_i32_0 : i32, i32
  }
  func.func @transform_3(%arg0: i32) -> (i32, i32) {
    %c0_i32 = arith.constant 0 : i32
    %c0_i32_0 = arith.constant 0 : i32
    %c0_i32_1 = arith.constant 0 : i32
    return %c0_i32, %c0_i32_0 : i32, i32
  }
  func.func @transform_4(%arg0: i32) -> (i32, i32) {
    %c0_i32 = arith.constant 0 : i32
    %c0_i32_0 = arith.constant 0 : i32
    %c0_i32_1 = arith.constant 0 : i32
    return %c0_i32, %c0_i32_0 : i32, i32
  }
  func.func @transform_5(%arg0: i32) -> (i32, i32) {
    %c0_i32 = arith.constant 0 : i32
    %c0_i32_0 = arith.constant 0 : i32
    return %arg0, %c0_i32 : i32, i32
  }
}

</mosaic_0001>

<llo_original>
// kernel: tpu_custom_call.1
$region0: #{tpu_custom_call.1}
  #allocation0 [shape = 'u32[]', space=smem, size = 0x4, offset = 0x4, fixed_abs, tag = 'smem constant byte address 0x4 - core index']
  #allocation1 [shape = 'u32[144,128]{1,0:T(1,128)}', space=vmem, size = 0x12000, scoped, tag = 'internal scratch']
  %s0 = inlined_call_operand.hbm [shape: f32[8,16], index: 0, kind: input, shape index: {}]
  %s1 = inlined_call_operand.hbm [shape: f32[16,32], index: 1, kind: input, shape index: {}]
  %s2 = inlined_call_operand.vmem [shape: f32[32,32], index: 2, kind: input, shape index: {}]
  %s3 = inlined_call_operand.vmem [shape: f32[32,4], index: 3, kind: input, shape index: {}]
  %s4 = inlined_call_operand.vmem [shape: f32[1,68], index: 4, kind: input, shape index: {}]
  %s5 = inlined_call_operand.vmem [shape: f32[8,4], index: 5, kind: output, shape index: {}]
  %s6 = sld [smem:[#allocation0]]
  $region38: #{tpu_custom_call.1} parent=0
    _
  %s8 = ssub.s32 1, %s6
  %s9 = scalar_select 0, %s8, %s6
  $region1: #{tpu_custom_call.1} parent=0
    #allocation2 [shape = 'u8[4096]{0}', space=vmem, size = 0x1000, scoped, tag = 'input window, operand 0, single buffered']
    #allocation3 [shape = 's32[1]{0}', space=sflag, size = 0x4, scoped, tag = 'scoped memory for tpu_custom_call.1']
    #allocation4 [shape = 'u8[8192]{0}', space=vmem, size = 0x2000, scoped, tag = 'input window, operand 1, single buffered']
    #allocation5 [shape = 's32[1]{0}', space=sflag, size = 0x4, scoped, tag = 'scoped memory for tpu_custom_call.1']
    %10 = vsyncpa [#allocation3], 0
    %11 = vsyncpa [#allocation5], 0
    // Predicated region
    $region2: #{tpu_custom_call.1} parent=1 // pred_check
      _
    $region3: #{tpu_custom_call.1} parent=1 // pred_check_branch
      %13 = sbr.rel (0) target = $region5
    $region4: #{tpu_custom_call.1} parent=1 // pred_region
      %s15 = ssub.s32 128, 128
      %16 = vsyncadd [#allocation3], %s15
      %s18 = sshll.u32 [#allocation2], 4
      %s19 = int_to_ptr.vmem [resolvable:$true] %s18
      %21 = dma.hbm_to_vmem [thread:$0]  %s0, 128, %s19, [#allocation3]
    $region5: #{tpu_custom_call.1} parent=1 // pred_fallthru
      _
    // Predicated region
    $region6: #{tpu_custom_call.1} parent=1 // pred_check
      _
    $region7: #{tpu_custom_call.1} parent=1 // pred_check_branch
      %23 = sbr.rel (0) target = $region9
    $region8: #{tpu_custom_call.1} parent=1 // pred_region
      %s25 = ssub.s32 256, 256
      %26 = vsyncadd [#allocation5], %s25
      %s27 = sshll.u32 [#allocation4], 4
      %s28 = int_to_ptr.vmem [resolvable:$true] %s27
      %33 = dma.hbm_to_vmem [thread:$0]  %s1, 256, %s28, [#allocation5], 128, 128, 8
    $region9: #{tpu_custom_call.1} parent=1 // pred_fallthru
      _
    // Predicated region
    $region10: #{tpu_custom_call.1} parent=1 // pred_check
      _
    $region11: #{tpu_custom_call.1} parent=1 // pred_check_branch
      %35 = sbr.rel (0) target = $region13
    $region12: #{tpu_custom_call.1} parent=1 // pred_region
      _
    $region13: #{tpu_custom_call.1} parent=1 // pred_fallthru
      _
    // Predicated region
    $region14: #{tpu_custom_call.1} parent=1 // pred_check
      _
    $region15: #{tpu_custom_call.1} parent=1 // pred_check_branch
      %37 = sbr.rel (0) target = $region17
    $region16: #{tpu_custom_call.1} parent=1 // pred_region
      _
    $region17: #{tpu_custom_call.1} parent=1 // pred_fallthru
      _
    // Predicated region
    $region18: #{tpu_custom_call.1} parent=1 // pred_check
      _
    $region19: #{tpu_custom_call.1} parent=1 // pred_check_branch
      %39 = sbr.rel (0) target = $region21
    $region20: #{tpu_custom_call.1} parent=1 // pred_region
      _
    $region21: #{tpu_custom_call.1} parent=1 // pred_fallthru
      _
    // Predicated region
    $region22: #{tpu_custom_call.1} parent=1 // pred_check
      _
    $region23: #{tpu_custom_call.1} parent=1 // pred_check_branch
      %41 = sbr.rel (0) target = $region25
    $region24: #{tpu_custom_call.1} parent=1 // pred_region
      %42 = dma.done [#allocation3], 128
    $region25: #{tpu_custom_call.1} parent=1 // pred_fallthru
      _
    // Predicated region
    $region26: #{tpu_custom_call.1} parent=1 // pred_check
      _
    $region27: #{tpu_custom_call.1} parent=1 // pred_check_branch
      %44 = sbr.rel (0) target = $region29
    $region28: #{tpu_custom_call.1} parent=1 // pred_region
      %45 = dma.done [#allocation5], 256
    $region29: #{tpu_custom_call.1} parent=1 // pred_fallthru
      _
    %v46 = vld [vmem:[#allocation2] sm:$0xff]
    %v47 = vld [vmem:[%s4] sm:$0x1]
    %v48 = vld [vmem:[#allocation4] sm:$0xff]
    %v49 = vld [vmem:[#allocation4 + $0x8] sm:$0xff]
    %v51 = vlaneseq
    %v52 = vshrl.u32 %v51, 7
    %v53 = vsub.s32 0, %v52
    %v54 = vrot.slane %v47, %v53
    %vm56 = vcmask 130048
    %v58 = vsel %vm56, %v46, 0
    %60 = vmatprep.subr.mxu0 0.0
    %61 = vmatpush1.msra.mxu0 0.0
    %62 = vmatprep.subr.mxu0 0.0
    %63 = vmatpush1.msra.mxu0 0.0
    %64 = vmatprep.subr.mxu0 0.0
    %65 = vmatpush1.msra.mxu0 0.0
    %66 = vmatprep.subr.mxu0 0.0
    %67 = vmatpush1.msra.mxu0 0.0
    %68 = vmatprep.subr.mxu0 0.0
    %69 = vmatpush1.msra.mxu0 0.0
    %70 = vmatprep.subr.mxu0 0.0
    %71 = vmatpush1.msra.mxu0 0.0
    %72 = vmatprep.subr.mxu0 0.0
    %73 = vmatpush1.msra.mxu0 0.0
    %74 = vmatprep.subr.mxu0 0.0
    %75 = vmatpush1.msra.mxu0 0.0
    %76 = vmatprep.subr.mxu0 0.0
    %77 = vmatpush1.msra.mxu0 0.0
    %78 = vmatprep.subr.mxu0 0.0
    %79 = vmatpush1.msra.mxu0 0.0
    %80 = vmatprep.subr.mxu0 0.0
    %81 = vmatpush1.msra.mxu0 0.0
    %82 = vmatprep.subr.mxu0 0.0
    %83 = vmatpush1.msra.mxu0 0.0
    %84 = vmatprep.subr.mxu0 0.0
    %85 = vmatpush1.msra.mxu0 0.0
    %86 = vmatprep.subr.mxu0 0.0
    %87 = vmatpush1.msra.mxu0 0.0
    %88 = vmatprep.subr.mxu0 0.0
    %89 = vmatpush1.msra.mxu0 %v49
    %90 = vmatprep.subr.mxu0 0.0
    %91 = vmatpush1.msra.mxu0 %v48
    %92 = vmatprep.subr.mxu0 0.0
    %93 = vmatpush2.msra.mxu0 0.0
    %94 = vmatprep.subr.mxu0 0.0
    %95 = vmatpush2.msra.mxu0 0.0
    %96 = vmatprep.subr.mxu0 0.0
    %97 = vmatpush2.msra.mxu0 0.0
    %98 = vmatprep.subr.mxu0 0.0
    %99 = vmatpush2.msra.mxu0 0.0
    %100 = vmatprep.subr.mxu0 0.0
    %101 = vmatpush2.msra.mxu0 0.0
    %102 = vmatprep.subr.mxu0 0.0
    %103 = vmatpush2.msra.mxu0 0.0
    %104 = vmatprep.subr.mxu0 0.0
    %105 = vmatpush2.msra.mxu0 0.0
    %106 = vmatprep.subr.mxu0 0.0
    %107 = vmatpush2.msra.mxu0 0.0
    %108 = vmatprep.subr.mxu0 0.0
    %109 = vmatpush2.msra.mxu0 0.0
    %110 = vmatprep.subr.mxu0 0.0
    %111 = vmatpush2.msra.mxu0 0.0
    %112 = vmatprep.subr.mxu0 0.0
    %113 = vmatpush2.msra.mxu0 0.0
    %114 = vmatprep.subr.mxu0 0.0
    %115 = vmatpush2.msra.mxu0 0.0
    %116 = vmatprep.subr.mxu0 0.0
    %117 = vmatpush2.msra.mxu0 0.0
    %118 = vmatprep.subr.mxu0 0.0
    %119 = vmatpush2.msra.mxu0 0.0
    %120 = vmatprep.subr.mxu0 0.0
    %121 = vmatpush2.msra.mxu0 0.0
    %122 = vmatprep.subr.mxu0 0.0
    %123 = vmatpush2.msra.mxu0 0.0
    %124 = vmatprep.mubr.f32.mxu0 0.0
    %125 = vmatmul.mubr.f32.gmra.mxu0 %v58
    %v126 = vpop.f32.mrf.mxu0
    %v127 = vadd.f32 %v54, %v126
    %v128 = vpop.f32.mrf.mxu0
    %129 = vdwg.mxu0
    %v130 = vmax.f32 %v127, 0.0
    %v131 = vld [vmem:[%s2] sm:$0xff]
    %v132 = vld [vmem:[%s2 + $0x8] sm:$0xff]
    %v133 = vld [vmem:[%s2 + $0x10] sm:$0xff]
    %v134 = vld [vmem:[%s2 + $0x18] sm:$0xff]
    %135 = vrot.lane.b32.xlu0 %v54, 96
    %v136 = vpop.permute.xlu0 %135
    %vm138 = vcmask 261120
    %v140 = vsel %vm138, %v130, 0
    %142 = vmatprep.subr.mxu0 0.0
    %143 = vmatpush1.msra.mxu0 0.0
    %144 = vmatprep.subr.mxu0 0.0
    %145 = vmatpush1.msra.mxu0 0.0
    %146 = vmatprep.subr.mxu0 0.0
    %147 = vmatpush1.msra.mxu0 0.0
    %148 = vmatprep.subr.mxu0 0.0
    %149 = vmatpush1.msra.mxu0 0.0
    %150 = vmatprep.subr.mxu0 0.0
    %151 = vmatpush1.msra.mxu0 0.0
    %152 = vmatprep.subr.mxu0 0.0
    %153 = vmatpush1.msra.mxu0 0.0
    %154 = vmatprep.subr.mxu0 0.0
    %155 = vmatpush1.msra.mxu0 0.0
    %156 = vmatprep.subr.mxu0 0.0
    %157 = vmatpush1.msra.mxu0 0.0
    %158 = vmatprep.subr.mxu0 0.0
    %159 = vmatpush1.msra.mxu0 0.0
    %160 = vmatprep.subr.mxu0 0.0
    %161 = vmatpush1.msra.mxu0 0.0
    %162 = vmatprep.subr.mxu0 0.0
    %163 = vmatpush1.msra.mxu0 0.0
    %164 = vmatprep.subr.mxu0 0.0
    %165 = vmatpush1.msra.mxu0 0.0
    %166 = vmatprep.subr.mxu0 0.0
    %167 = vmatpush1.msra.mxu0 %v134
    %168 = vmatprep.subr.mxu0 0.0
    %169 = vmatpush1.msra.mxu0 %v133
    %170 = vmatprep.subr.mxu0 0.0
    %171 = vmatpush1.msra.mxu0 %v132
    %172 = vmatprep.subr.mxu0 0.0
    %173 = vmatpush1.msra.mxu0 %v131
    %174 = vmatprep.subr.mxu0 0.0
    %175 = vmatpush2.msra.mxu0 0.0
    %176 = vmatprep.subr.mxu0 0.0
    %177 = vmatpush2.msra.mxu0 0.0
    %178 = vmatprep.subr.mxu0 0.0
    %179 = vmatpush2.msra.mxu0 0.0
    %180 = vmatprep.subr.mxu0 0.0
    %181 = vmatpush2.msra.mxu0 0.0
    %182 = vmatprep.subr.mxu0 0.0
    %183 = vmatpush2.msra.mxu0 0.0
    %184 = vmatprep.subr.mxu0 0.0
    %185 = vmatpush2.msra.mxu0 0.0
    %186 = vmatprep.subr.mxu0 0.0
    %187 = vmatpush2.msra.mxu0 0.0
    %188 = vmatprep.subr.mxu0 0.0
    %189 = vmatpush2.msra.mxu0 0.0
    %190 = vmatprep.subr.mxu0 0.0
    %191 = vmatpush2.msra.mxu0 0.0
    %192 = vmatprep.subr.mxu0 0.0
    %193 = vmatpush2.msra.mxu0 0.0
    %194 = vmatprep.subr.mxu0 0.0
    %195 = vmatpush2.msra.mxu0 0.0
    %196 = vmatprep.subr.mxu0 0.0
    %197 = vmatpush2.msra.mxu0 0.0
    %198 = vmatprep.subr.mxu0 0.0
    %199 = vmatpush2.msra.mxu0 0.0
    %200 = vmatprep.subr.mxu0 0.0
    %201 = vmatpush2.msra.mxu0 0.0
    %202 = vmatprep.subr.mxu0 0.0
    %203 = vmatpush2.msra.mxu0 0.0
    %204 = vmatprep.subr.mxu0 0.0
    %205 = vmatpush2.msra.mxu0 0.0
    %206 = vmatprep.mubr.f32.mxu0 0.0
    %207 = vmatmul.mubr.f32.gmra.mxu0 %v140
    %v208 = vpop.f32.mrf.mxu0
    %v209 = vadd.f32 %v136, %v208
    %v210 = vpop.f32.mrf.mxu0
    %211 = vdwg.mxu0
    %v212 = vmax.f32 %v209, 0.0
    %v213 = vld [vmem:[%s3] sm:$0xff]
    %v214 = vld [vmem:[%s3 + $0x8] sm:$0xff]
    %v215 = vld [vmem:[%s3 + $0x10] sm:$0xff]
    %v216 = vld [vmem:[%s3 + $0x18] sm:$0xff]
    %217 = vrot.lane.b32.xlu0 %v54, 64
    %v218 = vpop.permute.xlu0 %217
    %v221 = vsel %vm138, %v212, 0
    %223 = vmatprep.subr.mxu0 0.0
    %224 = vmatpush1.msra.mxu0 0.0
    %225 = vmatprep.subr.mxu0 0.0
    %226 = vmatpush1.msra.mxu0 0.0
    %227 = vmatprep.subr.mxu0 0.0
    %228 = vmatpush1.msra.mxu0 0.0
    %229 = vmatprep.subr.mxu0 0.0
    %230 = vmatpush1.msra.mxu0 0.0
    %231 = vmatprep.subr.mxu0 0.0
    %232 = vmatpush1.msra.mxu0 0.0
    %233 = vmatprep.subr.mxu0 0.0
    %234 = vmatpush1.msra.mxu0 0.0
    %235 = vmatprep.subr.mxu0 0.0
    %236 = vmatpush1.msra.mxu0 0.0
    %237 = vmatprep.subr.mxu0 0.0
    %238 = vmatpush1.msra.mxu0 0.0
    %239 = vmatprep.subr.mxu0 0.0
    %240 = vmatpush1.msra.mxu0 0.0
    %241 = vmatprep.subr.mxu0 0.0
    %242 = vmatpush1.msra.mxu0 0.0
    %243 = vmatprep.subr.mxu0 0.0
    %244 = vmatpush1.msra.mxu0 0.0
    %245 = vmatprep.subr.mxu0 0.0
    %246 = vmatpush1.msra.mxu0 0.0
    %247 = vmatprep.subr.mxu0 0.0
    %248 = vmatpush1.msra.mxu0 %v216
    %249 = vmatprep.subr.mxu0 0.0
    %250 = vmatpush1.msra.mxu0 %v215
    %251 = vmatprep.subr.mxu0 0.0
    %252 = vmatpush1.msra.mxu0 %v214
    %253 = vmatprep.subr.mxu0 0.0
    %254 = vmatpush1.msra.mxu0 %v213
    %255 = vmatprep.subr.mxu0 0.0
    %256 = vmatpush2.msra.mxu0 0.0
    %257 = vmatprep.subr.mxu0 0.0
    %258 = vmatpush2.msra.mxu0 0.0
    %259 = vmatprep.subr.mxu0 0.0
    %260 = vmatpush2.msra.mxu0 0.0
    %261 = vmatprep.subr.mxu0 0.0
    %262 = vmatpush2.msra.mxu0 0.0
    %263 = vmatprep.subr.mxu0 0.0
    %264 = vmatpush2.msra.mxu0 0.0
    %265 = vmatprep.subr.mxu0 0.0
    %266 = vmatpush2.msra.mxu0 0.0
    %267 = vmatprep.subr.mxu0 0.0
    %268 = vmatpush2.msra.mxu0 0.0
    %269 = vmatprep.subr.mxu0 0.0
    %270 = vmatpush2.msra.mxu0 0.0
    %271 = vmatprep.subr.mxu0 0.0
    %272 = vmatpush2.msra.mxu0 0.0
    %273 = vmatprep.subr.mxu0 0.0
    %274 = vmatpush2.msra.mxu0 0.0
    %275 = vmatprep.subr.mxu0 0.0
    %276 = vmatpush2.msra.mxu0 0.0
    %277 = vmatprep.subr.mxu0 0.0
    %278 = vmatpush2.msra.mxu0 0.0
    %279 = vmatprep.subr.mxu0 0.0
    %280 = vmatpush2.msra.mxu0 0.0
    %281 = vmatprep.subr.mxu0 0.0
    %282 = vmatpush2.msra.mxu0 0.0
    %283 = vmatprep.subr.mxu0 0.0
    %284 = vmatpush2.msra.mxu0 0.0
    %285 = vmatprep.subr.mxu0 0.0
    %286 = vmatpush2.msra.mxu0 0.0
    %287 = vmatprep.mubr.f32.mxu0 0.0
    %288 = vmatmul.mubr.f32.gmra.mxu0 %v221
    %v289 = vpop.f32.mrf.mxu0
    %v290 = vadd.f32 %v218, %v289
    %v291 = vpop.f32.mrf.mxu0
    %292 = vdwg.mxu0
    %v293 = vlaneseq
    %v294 = vand.u32 %v293, 127
    %v295 = vmax.f32 %v290, 1e-06
    %v296 = vmin.f32 %v295, 1.0
    %vm297 = vcmp.ge.s32.totalorder %v294, 2
    %v298 = vsel %vm297, %v296, %v290
    %vm299 = vcmask 31744
    %300 = vst.msk [vmem:[%s5] sm:$0xff] %vm299, %v298
    // Predicated region
    $region30: #{tpu_custom_call.1} parent=1 // pred_check
      _
    $region31: #{tpu_custom_call.1} parent=1 // pred_check_branch
      %302 = sbr.rel (0) target = $region33
    $region32: #{tpu_custom_call.1} parent=1 // pred_region
      _
    $region33: #{tpu_custom_call.1} parent=1 // pred_fallthru
      _
    // Predicated region
    $region34: #{tpu_custom_call.1} parent=1 // pred_check
      _
    $region35: #{tpu_custom_call.1} parent=1 // pred_check_branch
      %304 = sbr.rel (0) target = $region37
    $region36: #{tpu_custom_call.1} parent=1 // pred_region
      _
    $region37: #{tpu_custom_call.1} parent=1 // pred_fallthru
      _
    %305 = vsyncpa [#allocation3], 1
    %306 = vsyncpa [#allocation5], 1

</llo_original>
